<compile_context>
chip_gen: v7x
topology: tpu7x:2x2x1
jax: 0.10.0
libtpu: 0.0.40
codegen_flags: <defaults>
</compile_context>

<pallas_src>
import math

import jax
import jax.numpy as jnp
from jax.experimental import pallas as pl
from jax.experimental.pallas import tpu as pltpu


_LANE = 128


def _copy_kernel(x_ref, o_ref):
    # Identity copy of the current lane/sublane-dense tile.
    o_ref[...] = x_ref[...]


def _sublane_quantum(itemsize: int) -> int:
    # Sub-32-bit dtypes pack along sublanes: f32 -> 8, bf16 -> 16, int8/fp8 -> 32.
    if itemsize >= 4:
        return 8
    return 8 * (4 // itemsize)


def _vmem_budget():
    """Per-generation (block_cap_bytes, vmem_limit_bytes).

    Conservative, v7x-safe defaults (4 MiB blocks -> 16 MiB resident with
    in+out double-buffering, under an explicit 32 MiB scoped-VMEM limit).
    If we can positively identify a 128-MiB-VMEM part (v5e/v6e), raise the
    cap to 8 MiB and the limit to 64 MiB to halve the grid-step count.
    """
    block_cap = 4 * 1024 * 1024
    vmem_limit = 32 * 1024 * 1024
    try:
        info = pltpu.get_tpu_info()
        cap = getattr(info, "vmem_capacity_bytes", None)
        if cap is not None and cap >= 128 * 1024 * 1024:
            block_cap = 8 * 1024 * 1024
            vmem_limit = 64 * 1024 * 1024
    except Exception:
        pass  # unknown hardware -> keep conservative defaults
    return block_cap, vmem_limit


def _choose_2d_view(total: int, sublane: int):
    """Pick a (rows, cols) factorization of `total` that is lane-dense (cols a
    wide multiple of 128), preferring the widest cols that still leaves rows a
    multiple of the sublane quantum.  Returns None if total % 128 != 0."""
    widths = (4096, 2048, 1024, 512, 256, 128)
    for cols in widths:                      # sublane- and lane-dense
        if total % cols == 0 and (total // cols) % sublane == 0:
            return total // cols, cols
    for cols in widths:                      # lane-dense only
        if total % cols == 0:
            return total // cols, cols
    return None


def _choose_block_rows(rows: int, cols: int, itemsize: int, sublane: int,
                       block_cap: int):
    """Largest sublane-multiple divisor of `rows` whose (block_rows, cols)
    block fits block_cap.  Returns None if no legal block fits VMEM."""
    row_bytes = cols * itemsize
    if rows % sublane != 0:
        # The only legal block along rows is the full dim.
        return rows if rows * row_bytes <= block_cap else None
    max_rows = max(sublane, block_cap // row_bytes)
    max_rows = (max_rows // sublane) * sublane
    br = min(rows, max_rows)
    br = max(sublane, (br // sublane) * sublane)
    while br > sublane and rows % br != 0:
        br -= sublane
    if rows % br != 0:
        br = sublane  # sublane always divides rows here
    if br * row_bytes > block_cap:
        return None
    return br


def flatten(x: jax.Array, full: bool = False, use_kernel: bool = False) -> jax.Array:
    """Flatten like the PyTorch Flatten module (NCHW or any rank >= 1).

    Default path is a pure-metadata reshape (zero HBM traffic).  Set
    use_kernel=True to route through the bandwidth-optimal Pallas copy.
    """
    n = x.shape[0] if x.ndim >= 1 else 1
    f = math.prod(x.shape[1:]) if x.ndim > 1 else 1
    total = n * f
    out_shape = (total,) if full else (n, f)

    if not use_kernel:
        # Optimal path: metadata-only reshape, no custom call, no HBM traffic.
        return x.reshape(out_shape)

    itemsize = jnp.dtype(x.dtype).itemsize
    sublane = _sublane_quantum(itemsize)
    block_cap, vmem_limit = _vmem_budget()

    view = _choose_2d_view(total, sublane)
    if view is None:
        # Ragged total (not a multiple of 128): keep the (n, f) view and tile
        # over rows.  f < 128 would force masked partial stores -> the reshape
        # path is strictly better there.
        if f < _LANE:
            return x.reshape(out_shape)
        rows, cols = n, f
    else:
        rows, cols = view

    block_rows = _choose_block_rows(rows, cols, itemsize, sublane, block_cap)
    if block_rows is None:
        # No legal block fits VMEM (e.g. huge ragged tensor): do not risk a
        # VMEM OOM — the reshape path is exact and free.
        return x.reshape(out_shape)

    block = (block_rows, cols)
    grid = (rows // block_rows,)
    x2d = x.reshape(rows, cols)  # contiguous row-major view; order preserved
    bytes_total = total * itemsize

    out2d = pl.pallas_call(
        _copy_kernel,
        out_shape=jax.ShapeDtypeStruct((rows, cols), x.dtype),
        grid_spec=pl.GridSpec(
            grid=grid,
            in_specs=[pl.BlockSpec(block, lambda i: (i, 0))],
            out_specs=pl.BlockSpec(block, lambda i: (i, 0)),
        ),
        compiler_params=pltpu.CompilerParams(
            dimension_semantics=("parallel",),
            vmem_limit_bytes=vmem_limit,
        ),
        cost_estimate=pl.CostEstimate(
            flops=0, transcendentals=0, bytes_accessed=2 * bytes_total
        ),
    )(x2d)

    return out2d.reshape(out_shape)


if __name__ == "__main__":
    key = jax.random.PRNGKey(0)
    # Small NCHW input consistent with use at the end of a conv model.
    x = jax.random.normal(key, (2, 4, 16, 16), dtype=jnp.float32)

    # Kernel path, full=False  (x.view(x.size(0), -1))
    y = jax.block_until_ready(flatten(x, full=False, use_kernel=True))
    assert y.shape == (2, 4 * 16 * 16)
    assert jnp.array_equal(y, x.reshape(2, -1))

    # Kernel path, full=True  (x.view(-1))
    y_full = jax.block_until_ready(flatten(x, full=True, use_kernel=True))
    assert y_full.shape == (2 * 4 * 16 * 16,)
    assert jnp.array_equal(y_full, x.reshape(-1))

    # Default (recommended) metadata-only path must match exactly.
    y_fast = jax.block_until_ready(flatten(x, full=False))
    assert jnp.array_equal(y_fast, y)
    y_fast_full = jax.block_until_ready(flatten(x, full=True))
    assert jnp.array_equal(y_fast_full, y_full)

    # bf16 exercise of the dtype-aware sublane/tiling logic.
    xb = x.astype(jnp.bfloat16)
    yb = jax.block_until_ready(flatten(xb, full=False, use_kernel=True))
    assert jnp.array_equal(yb, xb.reshape(2, -1))

    print("KERNEL_OK")
</pallas_src>

<mosaic_0001>
module attributes {stable_mosaic.version = 11 : i64} {
  func.func @_copy_kernel(%arg0: i32, %arg1: memref<8x256xf32, #tpu.memory_space<vmem>>, %arg2: memref<8x256xf32, #tpu.memory_space<vmem>>) attributes {dimension_semantics = [#tpu.dimension_semantics<parallel>], iteration_bounds = array<i64: 1>, scalar_prefetch = 0 : i64, scratch_operands = 0 : i64, tpu.core_type = #tpu.core_type<tc>, window_params = [{transform_indices = @transform_0, window_bounds = array<i64: 8, 256>}, {transform_indices = @transform_1, window_bounds = array<i64: 8, 256>}]} {
    %c0 = arith.constant 0 : index
    %c0_0 = arith.constant 0 : index
    %0 = vector.load %arg1[%c0, %c0_0] : memref<8x256xf32, #tpu.memory_space<vmem>>, vector<8x256xf32>
    %c0_1 = arith.constant 0 : index
    %c0_2 = arith.constant 0 : index
    %1 = vector.load %arg2[%c0_1, %c0_2] : memref<8x256xf32, #tpu.memory_space<vmem>>, vector<8x256xf32>
    tpu.vector_store %arg2[%c0_1, %c0_2], %0 {strides = array<i32>} : memref<8x256xf32, #tpu.memory_space<vmem>>, vector<8x256xf32>,
    return
  }
  func.func @transform_0(%arg0: i32) -> (i32, i32) {
    %c0_i32 = arith.constant 0 : i32
    %c0_i32_0 = arith.constant 0 : i32
    return %arg0, %c0_i32 : i32, i32
  }
  func.func @transform_1(%arg0: i32) -> (i32, i32) {
    %c0_i32 = arith.constant 0 : i32
    %c0_i32_0 = arith.constant 0 : i32
    return %arg0, %c0_i32 : i32, i32
  }
}

</mosaic_0001>

<llo_original>
// kernel: tpu_custom_call.1
$region0: #{tpu_custom_call.1}
  #allocation0 [shape = 'u32[]', space=smem, size = 0x4, offset = 0x4, fixed_abs, tag = 'smem constant byte address 0x4 - core index']
  #allocation1 [shape = 'u32[144,128]{1,0:T(1,128)}', space=vmem, size = 0x12000, scoped, tag = 'internal scratch']
  %s0 = inlined_call_operand.hbm [shape: f32[8,256], index: 0, kind: input, shape index: {}]
  %s1 = inlined_call_operand.hbm [shape: f32[8,256], index: 1, kind: output, shape index: {}]
  %s2 = sld [smem:[#allocation0]]
  $region18: #{tpu_custom_call.1} parent=0
    _
  %s4 = ssub.s32 1, %s2
  %s5 = scalar_select 0, %s4, %s2
  $region1: #{tpu_custom_call.1} parent=0
    #allocation2 [shape = 'u8[8192]{0}', space=vmem, size = 0x2000, scoped, tag = 'input window, operand 0, single buffered']
    #allocation3 [shape = 's32[1]{0}', space=sflag, size = 0x4, scoped, tag = 'scoped memory for tpu_custom_call.1']
    #allocation4 [shape = 's32[1]{0}', space=sflag, size = 0x4, scoped, tag = 'scoped memory for tpu_custom_call.1']
    #allocation5 [shape = 'u8[8192]{0}', space=vmem, size = 0x2000, scoped, tag = 'output window, operand 0, single buffered']
    %6 = vsyncpa [#allocation3], 0
    %7 = vsyncpa [#allocation4], 0
    // Predicated region
    $region2: #{tpu_custom_call.1} parent=1 // pred_check
      _
    $region3: #{tpu_custom_call.1} parent=1 // pred_check_branch
      %9 = sbr.rel (0) target = $region5
    $region4: #{tpu_custom_call.1} parent=1 // pred_region
      %s11 = ssub.s32 256, 256
      %12 = vsyncadd [#allocation3], %s11
      %s14 = sshll.u32 [#allocation2], 4
      %s15 = int_to_ptr.vmem [resolvable:$true] %s14
      %17 = dma.hbm_to_vmem [thread:$0]  %s0, 256, %s15, [#allocation3]
    $region5: #{tpu_custom_call.1} parent=1 // pred_fallthru
      _
    // Predicated region
    $region6: #{tpu_custom_call.1} parent=1 // pred_check
      _
    $region7: #{tpu_custom_call.1} parent=1 // pred_check_branch
      %19 = sbr.rel (0) target = $region9
    $region8: #{tpu_custom_call.1} parent=1 // pred_region
      %20 = dma.done [#allocation3], 256
    $region9: #{tpu_custom_call.1} parent=1 // pred_fallthru
      _
    %v21 = vld [vmem:[#allocation2] sm:$0xff]
    %v22 = vld [vmem:[#allocation2 + $0x8] sm:$0xff]
    %23 = vst [vmem:[#allocation5] sm:$0xff] %v21
    %24 = vst [vmem:[#allocation5 + $0x8] sm:$0xff] %v22
    // Predicated region
    $region10: #{tpu_custom_call.1} parent=1 // pred_check
      _
    $region11: #{tpu_custom_call.1} parent=1 // pred_check_branch
      %26 = sbr.rel (0) target = $region13
    $region12: #{tpu_custom_call.1} parent=1 // pred_region
      %s28 = ssub.s32 256, 256
      %29 = vsyncadd [#allocation4], %s28
      %s31 = sshll.u32 [#allocation5], 4
      %s32 = int_to_ptr.vmem [resolvable:$true] %s31
      %34 = dma.vmem_to_hbm [thread:$0]  %s32, 256, %s1, [#allocation4]
    $region13: #{tpu_custom_call.1} parent=1 // pred_fallthru
      _
    // Predicated region
    $region14: #{tpu_custom_call.1} parent=1 // pred_check
      _
    $region15: #{tpu_custom_call.1} parent=1 // pred_check_branch
      %36 = sbr.rel (0) target = $region17
    $region16: #{tpu_custom_call.1} parent=1 // pred_region
      %37 = dma.done [#allocation4], 256
    $region17: #{tpu_custom_call.1} parent=1 // pred_fallthru
      _
    %38 = vsyncpa [#allocation3], 1
    %39 = vsyncpa [#allocation4], 1

</llo_original>
